<compile_context>
chip_gen: v7x
topology: tpu7x:2x2x1
jax: 0.10.0
libtpu: 0.0.40
codegen_flags: <defaults>
</compile_context>

<pallas_src>
import math
import jax
import jax.numpy as jnp
from jax.experimental import pallas as pl
from jax.experimental.pallas import tpu as pltpu


def gcn_kernel(x_ref, w_ref, adj_ref, b_ref, o_ref):
    """Single-step GCN forward.

    x_ref:   (N, Fin)            node features
    w_ref:   (Fin, Fout_pad)     weight, lane-padded
    adj_ref: (num_adj*N, N)      row-stacked adjacency matrices
    b_ref:   (1, Fout_pad)       bias, lane-padded
    o_ref:   (N, Fout_pad)       output, lane-dense
    """
    n = o_ref.shape[0]
    num_adj = adj_ref.shape[0] // n

    # support = X @ W   -> (N, Fout_pad), f32 accumulate on the MXU
    support = jnp.dot(x_ref[...], w_ref[...], preferred_element_type=jnp.float32)

    # One big matmul over the stacked adjacencies: (num_adj*N, N) @ (N, Fout_pad)
    stacked = jnp.dot(adj_ref[...], support, preferred_element_type=jnp.float32)

    # Sum the num_adj groups of N rows (static, tile-aligned slices), add bias.
    acc = stacked[0:n]
    for a in range(1, num_adj):
        acc = acc + stacked[a * n:(a + 1) * n]
    o_ref[...] = (acc + b_ref[...]).astype(o_ref.dtype)


def graph_convolution(x, weight, adj, bias):
    """x: (N, Fin), weight: (Fin, Fout), adj: (num_adj, N, N), bias: (Fout,)."""
    N, Fin = x.shape
    Fout = weight.shape[1]
    num_adj = adj.shape[0]

    # Lane-dense output: pad Fout up to a multiple of 128 (zeros are harmless,
    # the extra columns are sliced off afterwards).
    Fout_pad = pl.cdiv(Fout, 128) * 128
    w_pad = jnp.zeros((Fin, Fout_pad), jnp.float32).at[:, :Fout].set(
        weight.astype(jnp.float32))
    b_pad = jnp.zeros((1, Fout_pad), jnp.float32).at[0, :Fout].set(
        bias.astype(jnp.float32))

    # Row-stack the adjacency matrices: pure contiguous reshape, no transpose.
    adj_stacked = adj.astype(jnp.float32).reshape(num_adj * N, N)

    out_pad = pl.pallas_call(
        gcn_kernel,
        out_shape=jax.ShapeDtypeStruct((N, Fout_pad), jnp.float32),
        grid=(1,),
        in_specs=[
            pl.BlockSpec((N, Fin), lambda i: (0, 0)),             # x
            pl.BlockSpec((Fin, Fout_pad), lambda i: (0, 0)),      # weight (padded)
            pl.BlockSpec((num_adj * N, N), lambda i: (0, 0)),     # stacked adj
            pl.BlockSpec((1, Fout_pad), lambda i: (0, 0)),        # bias (padded)
        ],
        out_specs=pl.BlockSpec((N, Fout_pad), lambda i: (0, 0)),
        compiler_params=pltpu.CompilerParams(
            dimension_semantics=("arbitrary",)
        ),
    )(x.astype(jnp.float32), w_pad, adj_stacked, b_pad)

    return out_pad[:, :Fout]


def reference(x, weight, adj, bias):
    support = x @ weight
    out = (adj[0] @ support) + (adj[1] @ support) + (adj[2] @ support) + (adj[3] @ support)
    return out + bias


if __name__ == "__main__":
    # Small shapes consistent with the module's forward.
    N = 32            # number of graph nodes
    in_features = 16
    out_features = 16
    num_adj = 4       # the forward assumes exactly 4 adjacency matrices

    key = jax.random.PRNGKey(0)
    k_x, k_adj, k_w, k_b = jax.random.split(key, 4)

    x = jax.random.normal(k_x, (N, in_features), dtype=jnp.float32)
    # Dense stand-in for torch.spmm sparse adjacency matrices.
    adj = jax.random.uniform(k_adj, (num_adj, N, N), dtype=jnp.float32)

    # Deterministic parameter init matching reset_parameters():
    # uniform(-stdv, stdv) with stdv = 1/sqrt(out_features).
    stdv = 1.0 / math.sqrt(out_features)
    weight = jax.random.uniform(
        k_w, (in_features, out_features), minval=-stdv, maxval=stdv, dtype=jnp.float32
    )
    bias = jax.random.uniform(
        k_b, (out_features,), minval=-stdv, maxval=stdv, dtype=jnp.float32
    )

    out = graph_convolution(x, weight, adj, bias)
    out = jax.block_until_ready(out)

    ref = reference(x, weight, adj, bias)
    assert out.shape == (N, out_features)
    assert jnp.allclose(out, ref, atol=1e-4, rtol=1e-4), "mismatch vs reference"

    print("KERNEL_OK")
</pallas_src>

<mosaic_0001>
module attributes {stable_mosaic.version = 11 : i64} {
  func.func @gcn_kernel(%arg0: i32, %arg1: memref<32x16xf32, #tpu.memory_space<vmem>>, %arg2: memref<16x128xf32, #tpu.memory_space<vmem>>, %arg3: memref<128x32xf32, #tpu.memory_space<vmem>>, %arg4: memref<1x128xf32, #tpu.memory_space<vmem>>, %arg5: memref<32x128xf32, #tpu.memory_space<vmem>>) attributes {dimension_semantics = [#tpu.dimension_semantics<arbitrary>], iteration_bounds = array<i64: 1>, scalar_prefetch = 0 : i64, scratch_operands = 0 : i64, tpu.core_type = #tpu.core_type<tc>, window_params = [{pipeline_mode = #tpu.pipeline_mode<synchronous>, transform_indices = @transform_0, window_bounds = array<i64: 32, 16>}, {pipeline_mode = #tpu.pipeline_mode<synchronous>, transform_indices = @transform_1, window_bounds = array<i64: 16, 128>}, {pipeline_mode = #tpu.pipeline_mode<synchronous>, transform_indices = @transform_2, window_bounds = array<i64: 128, 32>}, {pipeline_mode = #tpu.pipeline_mode<synchronous>, transform_indices = @transform_3, window_bounds = array<i64: 1, 128>}, {pipeline_mode = #tpu.pipeline_mode<synchronous>, transform_indices = @transform_4, window_bounds = array<i64: 32, 128>}]} {
    %c0 = arith.constant 0 : index
    %c0_0 = arith.constant 0 : index
    %0 = vector.load %arg1[%c0, %c0_0] : memref<32x16xf32, #tpu.memory_space<vmem>>, vector<32x16xf32>
    %c0_1 = arith.constant 0 : index
    %c0_2 = arith.constant 0 : index
    %1 = vector.load %arg2[%c0_1, %c0_2] : memref<16x128xf32, #tpu.memory_space<vmem>>, vector<16x128xf32>
    %cst = arith.constant dense<0.000000e+00> : vector<32x128xf32>
    %2 = tpu.matmul %0, %1, %cst {dimension_numbers = #tpu.dot_dimension_numbers<[1], [0], [0], [1], [0, 0, 1, 1], [], []>} : vector<32x16xf32>, vector<16x128xf32>, vector<32x128xf32> -> vector<32x128xf32>
    %c0_3 = arith.constant 0 : index
    %c0_4 = arith.constant 0 : index
    %3 = vector.load %arg3[%c0_3, %c0_4] : memref<128x32xf32, #tpu.memory_space<vmem>>, vector<128x32xf32>
    %cst_5 = arith.constant dense<0.000000e+00> : vector<128x128xf32>
    %4 = tpu.matmul %3, %2, %cst_5 {dimension_numbers = #tpu.dot_dimension_numbers<[1], [0], [0], [1], [0, 0, 1, 1], [], []>} : vector<128x32xf32>, vector<32x128xf32>, vector<128x128xf32> -> vector<128x128xf32>
    %5 = vector.extract_strided_slice %4 {offsets = [0, 0], sizes = [32, 128], strides = [1, 1]} : vector<128x128xf32> to vector<32x128xf32>
    %6 = vector.extract_strided_slice %4 {offsets = [32, 0], sizes = [32, 128], strides = [1, 1]} : vector<128x128xf32> to vector<32x128xf32>
    %7 = arith.addf %5, %6 : vector<32x128xf32>
    %8 = vector.extract_strided_slice %4 {offsets = [64, 0], sizes = [32, 128], strides = [1, 1]} : vector<128x128xf32> to vector<32x128xf32>
    %9 = arith.addf %7, %8 : vector<32x128xf32>
    %10 = vector.extract_strided_slice %4 {offsets = [96, 0], sizes = [32, 128], strides = [1, 1]} : vector<128x128xf32> to vector<32x128xf32>
    %11 = arith.addf %9, %10 : vector<32x128xf32>
    %c0_6 = arith.constant 0 : index
    %c0_7 = arith.constant 0 : index
    %12 = vector.load %arg4[%c0_6, %c0_7] : memref<1x128xf32, #tpu.memory_space<vmem>>, vector<1x128xf32>
    %13 = vector.broadcast %12 : vector<1x128xf32> to vector<32x128xf32>
    %14 = arith.addf %11, %13 : vector<32x128xf32>
    %c0_8 = arith.constant 0 : index
    %c0_9 = arith.constant 0 : index
    %15 = vector.load %arg5[%c0_8, %c0_9] : memref<32x128xf32, #tpu.memory_space<vmem>>, vector<32x128xf32>
    tpu.vector_store %arg5[%c0_8, %c0_9], %14 {strides = array<i32>} : memref<32x128xf32, #tpu.memory_space<vmem>>, vector<32x128xf32>,
    return
  }
  func.func @transform_0(%arg0: i32) -> (i32, i32) {
    %c0_i32 = arith.constant 0 : i32
    %c0_i32_0 = arith.constant 0 : i32
    %c0_i32_1 = arith.constant 0 : i32
    return %c0_i32, %c0_i32_0 : i32, i32
  }
  func.func @transform_1(%arg0: i32) -> (i32, i32) {
    %c0_i32 = arith.constant 0 : i32
    %c0_i32_0 = arith.constant 0 : i32
    %c0_i32_1 = arith.constant 0 : i32
    return %c0_i32, %c0_i32_0 : i32, i32
  }
  func.func @transform_2(%arg0: i32) -> (i32, i32) {
    %c0_i32 = arith.constant 0 : i32
    %c0_i32_0 = arith.constant 0 : i32
    %c0_i32_1 = arith.constant 0 : i32
    return %c0_i32, %c0_i32_0 : i32, i32
  }
  func.func @transform_3(%arg0: i32) -> (i32, i32) {
    %c0_i32 = arith.constant 0 : i32
    %c0_i32_0 = arith.constant 0 : i32
    %c0_i32_1 = arith.constant 0 : i32
    return %c0_i32, %c0_i32_0 : i32, i32
  }
  func.func @transform_4(%arg0: i32) -> (i32, i32) {
    %c0_i32 = arith.constant 0 : i32
    %c0_i32_0 = arith.constant 0 : i32
    %c0_i32_1 = arith.constant 0 : i32
    return %c0_i32, %c0_i32_0 : i32, i32
  }
}

</mosaic_0001>

<llo_original>
// kernel: tpu_custom_call.1
$region0: #{tpu_custom_call.1}
  #allocation0 [shape = 'u32[]', space=smem, size = 0x4, offset = 0x4, fixed_abs, tag = 'smem constant byte address 0x4 - core index']
  #allocation1 [shape = 'u32[144,128]{1,0:T(1,128)}', space=vmem, size = 0x12000, scoped, tag = 'internal scratch']
  %s0 = inlined_call_operand.vmem [shape: f32[32,16], index: 0, kind: input, shape index: {}]
  %s1 = inlined_call_operand.vmem [shape: f32[16,128], index: 1, kind: input, shape index: {}]
  %s2 = inlined_call_operand.vmem [shape: f32[128,32], index: 2, kind: input, shape index: {}]
  %s3 = inlined_call_operand.vmem [shape: f32[1,128], index: 3, kind: input, shape index: {}]
  %s4 = inlined_call_operand.hbm [shape: f32[32,128], index: 4, kind: output, shape index: {}]
  %s5 = sld [smem:[#allocation0]]
  $region26: #{tpu_custom_call.1} parent=0
    _
  %s7 = ssub.s32 1, %s5
  %s8 = scalar_select 0, %s7, %s5
  $region1: #{tpu_custom_call.1} parent=0
    #allocation2 [shape = 'u8[16384]{0}', space=vmem, size = 0x4000, scoped, tag = 'output window, operand 0, single buffered']
    #allocation3 [shape = 's32[1]{0}', space=sflag, size = 0x4, scoped, tag = 'scoped memory for tpu_custom_call.1']
    %9 = vsyncpa [#allocation3], 0
    // Predicated region
    $region2: #{tpu_custom_call.1} parent=1 // pred_check
      _
    $region3: #{tpu_custom_call.1} parent=1 // pred_check_branch
      %11 = sbr.rel (0) target = $region5
    $region4: #{tpu_custom_call.1} parent=1 // pred_region
      _
    $region5: #{tpu_custom_call.1} parent=1 // pred_fallthru
      _
    // Predicated region
    $region6: #{tpu_custom_call.1} parent=1 // pred_check
      _
    $region7: #{tpu_custom_call.1} parent=1 // pred_check_branch
      %13 = sbr.rel (0) target = $region9
    $region8: #{tpu_custom_call.1} parent=1 // pred_region
      _
    $region9: #{tpu_custom_call.1} parent=1 // pred_fallthru
      _
    // Predicated region
    $region10: #{tpu_custom_call.1} parent=1 // pred_check
      _
    $region11: #{tpu_custom_call.1} parent=1 // pred_check_branch
      %15 = sbr.rel (0) target = $region13
    $region12: #{tpu_custom_call.1} parent=1 // pred_region
      _
    $region13: #{tpu_custom_call.1} parent=1 // pred_fallthru
      _
    // Predicated region
    $region14: #{tpu_custom_call.1} parent=1 // pred_check
      _
    $region15: #{tpu_custom_call.1} parent=1 // pred_check_branch
      %17 = sbr.rel (0) target = $region17
    $region16: #{tpu_custom_call.1} parent=1 // pred_region
      _
    $region17: #{tpu_custom_call.1} parent=1 // pred_fallthru
      _
    %v18 = vld [vmem:[%s0] sm:$0xff]
    %v19 = vld [vmem:[%s0 + $0x8] sm:$0xff]
    %v20 = vld [vmem:[%s0 + $0x10] sm:$0xff]
    %v21 = vld [vmem:[%s0 + $0x18] sm:$0xff]
    %v22 = vld [vmem:[%s1] sm:$0xff]
    %v23 = vld [vmem:[%s1 + $0x8] sm:$0xff]
    %vm24 = vcmask 130048
    %v26 = vsel %vm24, %v18, 0
    %v29 = vsel %vm24, %v19, 0
    %v32 = vsel %vm24, %v20, 0
    %v35 = vsel %vm24, %v21, 0
    %37 = vmatprep.subr.mxu0 0.0
    %38 = vmatpush1.msra.mxu0 %v22
    %39 = vmatprep.subr.mxu0 0.0
    %40 = vmatpush1.msra.mxu0 %v23
    %41 = vmatprep.subr.mxu0 0.0
    %42 = vmatpush1.msra.mxu0 0.0
    %43 = vmatprep.subr.mxu0 0.0
    %44 = vmatpush1.msra.mxu0 0.0
    %45 = vmatprep.subr.mxu0 0.0
    %46 = vmatpush1.msra.mxu0 0.0
    %47 = vmatprep.subr.mxu0 0.0
    %48 = vmatpush1.msra.mxu0 0.0
    %49 = vmatprep.subr.mxu0 0.0
    %50 = vmatpush1.msra.mxu0 0.0
    %51 = vmatprep.subr.mxu0 0.0
    %52 = vmatpush1.msra.mxu0 0.0
    %53 = vmatprep.subr.mxu0 0.0
    %54 = vmatpush1.msra.mxu0 0.0
    %55 = vmatprep.subr.mxu0 0.0
    %56 = vmatpush1.msra.mxu0 0.0
    %57 = vmatprep.subr.mxu0 0.0
    %58 = vmatpush1.msra.mxu0 0.0
    %59 = vmatprep.subr.mxu0 0.0
    %60 = vmatpush1.msra.mxu0 0.0
    %61 = vmatprep.subr.mxu0 0.0
    %62 = vmatpush1.msra.mxu0 0.0
    %63 = vmatprep.subr.mxu0 0.0
    %64 = vmatpush1.msra.mxu0 0.0
    %65 = vmatprep.subr.mxu0 0.0
    %66 = vmatpush1.msra.mxu0 0.0
    %67 = vmatprep.subr.mxu0 0.0
    %68 = vmatpush1.msra.mxu0 0.0
    %69 = vmatprep.subr.mxu0 0.0
    %70 = vmatpush1.msra.mxu0 0.0
    %71 = vmatprep.subr.mxu0 0.0
    %72 = vmatpush1.msra.mxu0 0.0
    %73 = vmatprep.subr.mxu0 0.0
    %74 = vmatpush1.msra.mxu0 0.0
    %75 = vmatprep.subr.mxu0 0.0
    %76 = vmatpush1.msra.mxu0 0.0
    %77 = vmatprep.subr.mxu0 0.0
    %78 = vmatpush1.msra.mxu0 0.0
    %79 = vmatprep.subr.mxu0 0.0
    %80 = vmatpush1.msra.mxu0 0.0
    %81 = vmatprep.subr.mxu0 0.0
    %82 = vmatpush1.msra.mxu0 0.0
    %83 = vmatprep.subr.mxu0 0.0
    %84 = vmatpush1.msra.mxu0 0.0
    %85 = vmatprep.subr.mxu0 0.0
    %86 = vmatpush1.msra.mxu0 0.0
    %87 = vmatprep.subr.mxu0 0.0
    %88 = vmatpush1.msra.mxu0 0.0
    %89 = vmatprep.subr.mxu0 0.0
    %90 = vmatpush1.msra.mxu0 0.0
    %91 = vmatprep.subr.mxu0 0.0
    %92 = vmatpush1.msra.mxu0 0.0
    %93 = vmatprep.subr.mxu0 0.0
    %94 = vmatpush1.msra.mxu0 0.0
    %95 = vmatprep.subr.mxu0 0.0
    %96 = vmatpush1.msra.mxu0 0.0
    %97 = vmatprep.subr.mxu0 0.0
    %98 = vmatpush1.msra.mxu0 0.0
    %99 = vmatprep.subr.mxu0 0.0
    %100 = vmatpush1.msra.mxu0 0.0
    %101 = vmatprep.mubr.f32.mxu0 0.0
    %102 = vmatmul.mubr.f32.gmra.mrb[0].mxu0 %v26
    %v103 = vpop.f32.mrb[0].mxu0
    %v104 = vadd.f32 0.0, %v103
    %v105 = vpop.f32.mrb[0].mxu0
    %106 = vmatprep.mubr.f32.mxu0 0.0
    %107 = vmatmul.mubr.f32.gmra.mrb[0].mxu0 %v29
    %v108 = vpop.f32.mrb[0].mxu0
    %v109 = vadd.f32 0.0, %v108
    %v110 = vpop.f32.mrb[0].mxu0
    %111 = vmatprep.mubr.f32.mxu0 0.0
    %112 = vmatmul.mubr.f32.gmra.mrb[0].mxu0 %v32
    %v113 = vpop.f32.mrb[0].mxu0
    %v114 = vadd.f32 0.0, %v113
    %v115 = vpop.f32.mrb[0].mxu0
    %116 = vmatprep.mubr.f32.mxu0 0.0
    %117 = vmatmul.mubr.f32.gmra.mrb[0].mxu0 %v35
    %v118 = vpop.f32.mrb[0].mxu0
    %v119 = vadd.f32 0.0, %v118
    %v120 = vpop.f32.mrb[0].mxu0
    %121 = vdwg.mxu0
    %v122 = vld [vmem:[%s2] sm:$0xff]
    %v123 = vld [vmem:[%s2 + $0x8] sm:$0xff]
    %v124 = vld [vmem:[%s2 + $0x10] sm:$0xff]
    %v125 = vld [vmem:[%s2 + $0x18] sm:$0xff]
    %v126 = vld [vmem:[%s2 + $0x20] sm:$0xff]
    %v127 = vld [vmem:[%s2 + $0x28] sm:$0xff]
    %v128 = vld [vmem:[%s2 + $0x30] sm:$0xff]
    %v129 = vld [vmem:[%s2 + $0x38] sm:$0xff]
    %v130 = vld [vmem:[%s2 + $0x40] sm:$0xff]
    %v131 = vld [vmem:[%s2 + $0x48] sm:$0xff]
    %v132 = vld [vmem:[%s2 + $0x50] sm:$0xff]
    %v133 = vld [vmem:[%s2 + $0x58] sm:$0xff]
    %v134 = vld [vmem:[%s2 + $0x60] sm:$0xff]
    %v135 = vld [vmem:[%s2 + $0x68] sm:$0xff]
    %v136 = vld [vmem:[%s2 + $0x70] sm:$0xff]
    %v137 = vld [vmem:[%s2 + $0x78] sm:$0xff]
    %vm138 = vcmask 261120
    %v140 = vsel %vm138, %v122, 0
    %v143 = vsel %vm138, %v123, 0
    %v146 = vsel %vm138, %v124, 0
    %v149 = vsel %vm138, %v125, 0
    %v152 = vsel %vm138, %v126, 0
    %v155 = vsel %vm138, %v127, 0
    %v158 = vsel %vm138, %v128, 0
    %v161 = vsel %vm138, %v129, 0
    %v164 = vsel %vm138, %v130, 0
    %v167 = vsel %vm138, %v131, 0
    %v170 = vsel %vm138, %v132, 0
    %v173 = vsel %vm138, %v133, 0
    %v176 = vsel %vm138, %v134, 0
    %v179 = vsel %vm138, %v135, 0
    %v182 = vsel %vm138, %v136, 0
    %v185 = vsel %vm138, %v137, 0
    %187 = vmatprep.subr.mxu0 0.0
    %188 = vmatpush1.msra.mxu0 %v104
    %189 = vmatprep.subr.mxu0 0.0
    %190 = vmatpush1.msra.mxu0 %v109
    %191 = vmatprep.subr.mxu0 0.0
    %192 = vmatpush1.msra.mxu0 %v114
    %193 = vmatprep.subr.mxu0 0.0
    %194 = vmatpush1.msra.mxu0 %v119
    %195 = vmatprep.subr.mxu0 0.0
    %196 = vmatpush1.msra.mxu0 0.0
    %197 = vmatprep.subr.mxu0 0.0
    %198 = vmatpush1.msra.mxu0 0.0
    %199 = vmatprep.subr.mxu0 0.0
    %200 = vmatpush1.msra.mxu0 0.0
    %201 = vmatprep.subr.mxu0 0.0
    %202 = vmatpush1.msra.mxu0 0.0
    %203 = vmatprep.subr.mxu0 0.0
    %204 = vmatpush1.msra.mxu0 0.0
    %205 = vmatprep.subr.mxu0 0.0
    %206 = vmatpush1.msra.mxu0 0.0
    %207 = vmatprep.subr.mxu0 0.0
    %208 = vmatpush1.msra.mxu0 0.0
    %209 = vmatprep.subr.mxu0 0.0
    %210 = vmatpush1.msra.mxu0 0.0
    %211 = vmatprep.subr.mxu0 0.0
    %212 = vmatpush1.msra.mxu0 0.0
    %213 = vmatprep.subr.mxu0 0.0
    %214 = vmatpush1.msra.mxu0 0.0
    %215 = vmatprep.subr.mxu0 0.0
    %216 = vmatpush1.msra.mxu0 0.0
    %217 = vmatprep.subr.mxu0 0.0
    %218 = vmatpush1.msra.mxu0 0.0
    %219 = vmatprep.subr.mxu0 0.0
    %220 = vmatpush1.msra.mxu0 0.0
    %221 = vmatprep.subr.mxu0 0.0
    %222 = vmatpush1.msra.mxu0 0.0
    %223 = vmatprep.subr.mxu0 0.0
    %224 = vmatpush1.msra.mxu0 0.0
    %225 = vmatprep.subr.mxu0 0.0
    %226 = vmatpush1.msra.mxu0 0.0
    %227 = vmatprep.subr.mxu0 0.0
    %228 = vmatpush1.msra.mxu0 0.0
    %229 = vmatprep.subr.mxu0 0.0
    %230 = vmatpush1.msra.mxu0 0.0
    %231 = vmatprep.subr.mxu0 0.0
    %232 = vmatpush1.msra.mxu0 0.0
    %233 = vmatprep.subr.mxu0 0.0
    %234 = vmatpush1.msra.mxu0 0.0
    %235 = vmatprep.subr.mxu0 0.0
    %236 = vmatpush1.msra.mxu0 0.0
    %237 = vmatprep.subr.mxu0 0.0
    %238 = vmatpush1.msra.mxu0 0.0
    %239 = vmatprep.subr.mxu0 0.0
    %240 = vmatpush1.msra.mxu0 0.0
    %241 = vmatprep.subr.mxu0 0.0
    %242 = vmatpush1.msra.mxu0 0.0
    %243 = vmatprep.subr.mxu0 0.0
    %244 = vmatpush1.msra.mxu0 0.0
    %245 = vmatprep.subr.mxu0 0.0
    %246 = vmatpush1.msra.mxu0 0.0
    %247 = vmatprep.subr.mxu0 0.0
    %248 = vmatpush1.msra.mxu0 0.0
    %249 = vmatprep.subr.mxu0 0.0
    %250 = vmatpush1.msra.mxu0 0.0
    %251 = vmatprep.mubr.f32.mxu0 0.0
    %252 = vmatmul.mubr.f32.gmra.mrb[0].mxu0 %v140
    %v253 = vpop.f32.mrb[0].mxu0
    %v254 = vadd.f32 0.0, %v253
    %v255 = vpop.f32.mrb[0].mxu0
    %256 = vmatprep.mubr.f32.mxu0 0.0
    %257 = vmatmul.mubr.f32.gmra.mrb[0].mxu0 %v143
    %v258 = vpop.f32.mrb[0].mxu0
    %v259 = vadd.f32 0.0, %v258
    %v260 = vpop.f32.mrb[0].mxu0
    %261 = vmatprep.mubr.f32.mxu0 0.0
    %262 = vmatmul.mubr.f32.gmra.mrb[0].mxu0 %v146
    %v263 = vpop.f32.mrb[0].mxu0
    %v264 = vadd.f32 0.0, %v263
    %v265 = vpop.f32.mrb[0].mxu0
    %266 = vmatprep.mubr.f32.mxu0 0.0
    %267 = vmatmul.mubr.f32.gmra.mrb[0].mxu0 %v149
    %v268 = vpop.f32.mrb[0].mxu0
    %v269 = vadd.f32 0.0, %v268
    %v270 = vpop.f32.mrb[0].mxu0
    %271 = vmatprep.mubr.f32.mxu0 0.0
    %272 = vmatmul.mubr.f32.gmra.mrb[0].mxu0 %v152
    %v273 = vpop.f32.mrb[0].mxu0
    %v274 = vadd.f32 0.0, %v273
    %v275 = vpop.f32.mrb[0].mxu0
    %276 = vmatprep.mubr.f32.mxu0 0.0
    %277 = vmatmul.mubr.f32.gmra.mrb[0].mxu0 %v155
    %v278 = vpop.f32.mrb[0].mxu0
    %v279 = vadd.f32 0.0, %v278
    %v280 = vpop.f32.mrb[0].mxu0
    %281 = vmatprep.mubr.f32.mxu0 0.0
    %282 = vmatmul.mubr.f32.gmra.mrb[0].mxu0 %v158
    %v283 = vpop.f32.mrb[0].mxu0
    %v284 = vadd.f32 0.0, %v283
    %v285 = vpop.f32.mrb[0].mxu0
    %286 = vmatprep.mubr.f32.mxu0 0.0
    %287 = vmatmul.mubr.f32.gmra.mrb[0].mxu0 %v161
    %v288 = vpop.f32.mrb[0].mxu0
    %v289 = vadd.f32 0.0, %v288
    %v290 = vpop.f32.mrb[0].mxu0
    %291 = vmatprep.mubr.f32.mxu0 0.0
    %292 = vmatmul.mubr.f32.gmra.mrb[0].mxu0 %v164
    %v293 = vpop.f32.mrb[0].mxu0
    %v294 = vadd.f32 0.0, %v293
    %v295 = vpop.f32.mrb[0].mxu0
    %296 = vmatprep.mubr.f32.mxu0 0.0
    %297 = vmatmul.mubr.f32.gmra.mrb[0].mxu0 %v167
    %v298 = vpop.f32.mrb[0].mxu0
    %v299 = vadd.f32 0.0, %v298
    %v300 = vpop.f32.mrb[0].mxu0
    %301 = vmatprep.mubr.f32.mxu0 0.0
    %302 = vmatmul.mubr.f32.gmra.mrb[0].mxu0 %v170
    %v303 = vpop.f32.mrb[0].mxu0
    %v304 = vadd.f32 0.0, %v303
    %v305 = vpop.f32.mrb[0].mxu0
    %306 = vmatprep.mubr.f32.mxu0 0.0
    %307 = vmatmul.mubr.f32.gmra.mrb[0].mxu0 %v173
    %v308 = vpop.f32.mrb[0].mxu0
    %v309 = vadd.f32 0.0, %v308
    %v310 = vpop.f32.mrb[0].mxu0
    %311 = vmatprep.mubr.f32.mxu0 0.0
    %312 = vmatmul.mubr.f32.gmra.mrb[0].mxu0 %v176
    %v313 = vpop.f32.mrb[0].mxu0
    %v314 = vadd.f32 0.0, %v313
    %v315 = vpop.f32.mrb[0].mxu0
    %316 = vmatprep.mubr.f32.mxu0 0.0
    %317 = vmatmul.mubr.f32.gmra.mrb[0].mxu0 %v179
    %v318 = vpop.f32.mrb[0].mxu0
    %v319 = vadd.f32 0.0, %v318
    %v320 = vpop.f32.mrb[0].mxu0
    %321 = vmatprep.mubr.f32.mxu0 0.0
    %322 = vmatmul.mubr.f32.gmra.mrb[0].mxu0 %v182
    %v323 = vpop.f32.mrb[0].mxu0
    %v324 = vadd.f32 0.0, %v323
    %v325 = vpop.f32.mrb[0].mxu0
    %326 = vmatprep.mubr.f32.mxu0 0.0
    %327 = vmatmul.mubr.f32.gmra.mrb[0].mxu0 %v185
    %v328 = vpop.f32.mrb[0].mxu0
    %v329 = vadd.f32 0.0, %v328
    %v330 = vpop.f32.mrb[0].mxu0
    %331 = vdwg.mxu0
    %v332 = vadd.f32 %v254, %v274
    %v333 = vadd.f32 %v259, %v279
    %v334 = vadd.f32 %v264, %v284
    %v335 = vadd.f32 %v269, %v289
    %v336 = vadd.f32 %v332, %v294
    %v337 = vadd.f32 %v333, %v299
    %v338 = vadd.f32 %v334, %v304
    %v339 = vadd.f32 %v335, %v309
    %v340 = vadd.f32 %v336, %v314
    %v341 = vadd.f32 %v337, %v319
    %v342 = vadd.f32 %v338, %v324
    %v343 = vadd.f32 %v339, %v329
    %v344 = vld [vmem:[%s3] sm:$0x1]
    %v346 = vlaneseq
    %v347 = vshrl.u32 %v346, 7
    %v348 = vsub.s32 0, %v347
    %v349 = vrot.slane %v344, %v348
    %v351 = vadd.f32 %v340, %v349
    %v352 = vadd.f32 %v341, %v349
    %v353 = vadd.f32 %v342, %v349
    %v354 = vadd.f32 %v343, %v349
    %355 = vst [vmem:[#allocation2] sm:$0xff] %v351
    %356 = vst [vmem:[#allocation2 + $0x8] sm:$0xff] %v352
    %357 = vst [vmem:[#allocation2 + $0x10] sm:$0xff] %v353
    %358 = vst [vmem:[#allocation2 + $0x18] sm:$0xff] %v354
    // Predicated region
    $region18: #{tpu_custom_call.1} parent=1 // pred_check
      _
    $region19: #{tpu_custom_call.1} parent=1 // pred_check_branch
      %360 = sbr.rel (0) target = $region21
    $region20: #{tpu_custom_call.1} parent=1 // pred_region
      %s362 = ssub.s32 512, 512
      %363 = vsyncadd [#allocation3], %s362
      %s364 = sshll.u32 [#allocation2], 4
      %s365 = int_to_ptr.vmem [resolvable:$true] %s364
      %370 = dma.vmem_to_hbm [thread:$0]  %s365, 512, %s4, [#allocation3], 128, 128, 8
    $region21: #{tpu_custom_call.1} parent=1 // pred_fallthru
      _
    // Predicated region
    $region22: #{tpu_custom_call.1} parent=1 // pred_check
      _
    $region23: #{tpu_custom_call.1} parent=1 // pred_check_branch
      %372 = sbr.rel (0) target = $region25
    $region24: #{tpu_custom_call.1} parent=1 // pred_region
      %373 = dma.done [#allocation3], 512
    $region25: #{tpu_custom_call.1} parent=1 // pred_fallthru
      _
    %374 = vsyncpa [#allocation3], 1

</llo_original>
